<compile_context>
chip_gen: v7x
topology: tpu7x:2x2x1
jax: 0.10.0
libtpu: 0.0.40
codegen_flags: <defaults>
</compile_context>

<pallas_src>
import jax
import jax.numpy as jnp
from jax.experimental import pallas as pl
from jax.experimental.pallas import tpu as pltpu

HIDDEN1 = 128
HIDDEN2 = 64


def _round_up(x, m):
    return ((x + m - 1) // m) * m


def prior_mlp_kernel(x_ref, w1_ref, b1_ref, w2_ref, b2_ref, w3_ref, b3_ref, o_ref):
    # fc1 + ReLU: bf16 MXU operands, f32 accumulation, f32 element-wise tail.
    x = x_ref[...].astype(jnp.bfloat16)
    h1 = jnp.dot(x, w1_ref[...], preferred_element_type=jnp.float32)
    h1 = jnp.maximum(h1 + b1_ref[...], 0.0)
    # fc2 + ReLU (logical 64-wide).
    h2 = jnp.dot(h1.astype(jnp.bfloat16), w2_ref[...],
                 preferred_element_type=jnp.float32)
    h2 = jnp.maximum(h2 + b2_ref[...], 0.0)
    # fc3, no activation; write the logical 64 columns directly.
    h3 = jnp.dot(h2.astype(jnp.bfloat16), w3_ref[...],
                 preferred_element_type=jnp.float32)
    o_ref[...] = (h3 + b3_ref[...]).astype(o_ref.dtype)


def prior_forward(x, kparams, *, tile_b=1024):
    """x: [B, input_size] float32 (bf16 also accepted). kparams from make_kernel_params."""
    B, in_size = x.shape
    w1, b1 = kparams["w1"], kparams["b1"]
    w2, b2 = kparams["w2"], kparams["b2"]
    w3, b3 = kparams["w3"], kparams["b3"]
    out_size = w3.shape[1]

    # Batch tile: multiple of 8 sublanes, no wrapper-side padding of x.
    tb = _round_up(min(tile_b, _round_up(max(B, 1), 8)), 8)
    # Keep >= 2 grid steps on moderate/large batches so v7x's two TensorCores
    # both get work (negligible cost on single-core v5e/v6e).
    if B >= 256 and pl.cdiv(B, tb) < 2:
        tb = _round_up(pl.cdiv(B, 2), 8)
    grid = (pl.cdiv(B, tb),)

    flops = 2 * B * (in_size * w1.shape[1]
                     + w1.shape[1] * w2.shape[1]
                     + w2.shape[1] * out_size)
    bytes_accessed = (x.size * x.dtype.itemsize
                      + sum(a.size * a.dtype.itemsize
                            for a in (w1, b1, w2, b2, w3, b3))
                      + B * out_size * 4)

    out = pl.pallas_call(
        prior_mlp_kernel,
        out_shape=jax.ShapeDtypeStruct((B, out_size), jnp.float32),
        grid=grid,
        in_specs=[
            pl.BlockSpec((tb, in_size), lambda i: (i, 0)),
            # Weights/biases: block index constant across the grid -> stay
            # resident in VMEM, no per-step re-DMA.
            pl.BlockSpec(w1.shape, lambda i: (0, 0)),
            pl.BlockSpec(b1.shape, lambda i: (0, 0)),
            pl.BlockSpec(w2.shape, lambda i: (0, 0)),
            pl.BlockSpec(b2.shape, lambda i: (0, 0)),
            pl.BlockSpec(w3.shape, lambda i: (0, 0)),
            pl.BlockSpec(b3.shape, lambda i: (0, 0)),
        ],
        out_specs=pl.BlockSpec((tb, out_size), lambda i: (i, 0)),
        compiler_params=pltpu.CompilerParams(
            dimension_semantics=("parallel",),     # megacore sharding on v7x
            vmem_limit_bytes=32 * 1024 * 1024,     # headroom for big tiles on v5e
        ),
        cost_estimate=pl.CostEstimate(
            flops=flops, transcendentals=0, bytes_accessed=bytes_accessed),
    )(x, w1, b1, w2, b2, w3, b3)

    return out


def init_prior_params(key, input_size=256, output_size=64):
    """Logical f32 params mimicking PyTorch default Linear init
    (uniform(-1/sqrt(fan_in), 1/sqrt(fan_in))). Weights stored transposed as
    (in, out); biases stored as (1, out)."""
    dims = [(input_size, HIDDEN1), (HIDDEN1, HIDDEN2), (HIDDEN2, output_size)]
    params = {}
    for i, (fan_in, fan_out) in enumerate(dims, start=1):
        key, kw, kb = jax.random.split(key, 3)
        bound = 1.0 / (fan_in ** 0.5)
        params[f"w{i}"] = jax.random.uniform(
            kw, (fan_in, fan_out), jnp.float32, -bound, bound)
        params[f"b{i}"] = jax.random.uniform(
            kb, (1, fan_out), jnp.float32, -bound, bound)
    return params


def make_kernel_params(params):
    """Kernel params: weights (in, out) cast to bf16 for the MXU, biases f32.
    No column padding -- fc2/fc3 keep their logical 64-wide shapes."""
    return {
        "w1": params["w1"].astype(jnp.bfloat16),   # (256, 128)
        "b1": params["b1"].astype(jnp.float32),    # (1, 128)
        "w2": params["w2"].astype(jnp.bfloat16),   # (128, 64)
        "b2": params["b2"].astype(jnp.float32),    # (1, 64)
        "w3": params["w3"].astype(jnp.bfloat16),   # (64, 64)
        "b3": params["b3"].astype(jnp.float32),    # (1, 64)
    }


def prior_reference_f32(x, params):
    """Pure-f32 reference matching the original PyTorch forward."""
    h = jnp.maximum(x @ params["w1"] + params["b1"], 0.0)
    h = jnp.maximum(h @ params["w2"] + params["b2"], 0.0)
    return h @ params["w3"] + params["b3"]


def prior_reference_bf16(x, kparams):
    """Reference matching the kernel's math (bf16 MXU operands, f32 accum)."""
    def dot(a, w):
        return jnp.dot(a.astype(jnp.bfloat16), w,
                       preferred_element_type=jnp.float32)
    h = jnp.maximum(dot(x, kparams["w1"]) + kparams["b1"], 0.0)
    h = jnp.maximum(dot(h, kparams["w2"]) + kparams["b2"], 0.0)
    return dot(h, kparams["w3"]) + kparams["b3"]


if __name__ == "__main__":
    key = jax.random.PRNGKey(0)
    key, kx = jax.random.split(key)

    input_size, output_size = 256, 64
    batch = 8
    x = jax.random.normal(kx, (batch, input_size), jnp.float32)

    params = init_prior_params(key, input_size, output_size)
    kparams = make_kernel_params(params)

    out = jax.block_until_ready(prior_forward(x, kparams))
    assert out.shape == (batch, output_size)

    # Tight check against the bf16-operand reference (same math as the kernel).
    ref_bf16 = prior_reference_bf16(x, kparams)
    assert jnp.allclose(out, ref_bf16, atol=1e-3, rtol=1e-3), float(
        jnp.max(jnp.abs(out - ref_bf16)))

    # Loose check against the original f32 semantics (bf16 operand quantization
    # only -- accumulation is f32).
    ref_f32 = prior_reference_f32(x, params)
    assert jnp.allclose(out, ref_f32, atol=3e-2, rtol=3e-2), float(
        jnp.max(jnp.abs(out - ref_f32)))

    # Multi-step grid + ragged (partial) final block, exercising the
    # no-jnp.pad / clipped-writeback path: 200 rows with a 64-row tile.
    key, kx2 = jax.random.split(key)
    x2 = jax.random.normal(kx2, (200, input_size), jnp.float32)
    out2 = jax.block_until_ready(prior_forward(x2, kparams, tile_b=64))
    assert out2.shape == (200, output_size)
    ref2 = prior_reference_bf16(x2, kparams)
    assert jnp.allclose(out2, ref2, atol=1e-3, rtol=1e-3), float(
        jnp.max(jnp.abs(out2 - ref2)))

    print("KERNEL_OK")
</pallas_src>

<mosaic_0001>
module attributes {stable_mosaic.version = 11 : i64} {
  func.func @prior_mlp_kernel(%arg0: i32, %arg1: memref<8x256xf32, #tpu.memory_space<vmem>>, %arg2: memref<256x128xbf16, #tpu.memory_space<vmem>>, %arg3: memref<1x128xf32, #tpu.memory_space<vmem>>, %arg4: memref<128x64xbf16, #tpu.memory_space<vmem>>, %arg5: memref<1x64xf32, #tpu.memory_space<vmem>>, %arg6: memref<64x64xbf16, #tpu.memory_space<vmem>>, %arg7: memref<1x64xf32, #tpu.memory_space<vmem>>, %arg8: memref<8x64xf32, #tpu.memory_space<vmem>>) attributes {dimension_semantics = [#tpu.dimension_semantics<parallel>], iteration_bounds = array<i64: 1>, scalar_prefetch = 0 : i64, scratch_operands = 0 : i64, tpu.core_type = #tpu.core_type<tc>, window_params = [{transform_indices = @transform_0, window_bounds = array<i64: 8, 256>}, {pipeline_mode = #tpu.pipeline_mode<synchronous>, transform_indices = @transform_1, window_bounds = array<i64: 256, 128>}, {pipeline_mode = #tpu.pipeline_mode<synchronous>, transform_indices = @transform_2, window_bounds = array<i64: 1, 128>}, {pipeline_mode = #tpu.pipeline_mode<synchronous>, transform_indices = @transform_3, window_bounds = array<i64: 128, 64>}, {pipeline_mode = #tpu.pipeline_mode<synchronous>, transform_indices = @transform_4, window_bounds = array<i64: 1, 64>}, {pipeline_mode = #tpu.pipeline_mode<synchronous>, transform_indices = @transform_5, window_bounds = array<i64: 64, 64>}, {pipeline_mode = #tpu.pipeline_mode<synchronous>, transform_indices = @transform_6, window_bounds = array<i64: 1, 64>}, {transform_indices = @transform_7, window_bounds = array<i64: 8, 64>}]} {
    %c0 = arith.constant 0 : index
    %c0_0 = arith.constant 0 : index
    %0 = vector.load %arg1[%c0, %c0_0] : memref<8x256xf32, #tpu.memory_space<vmem>>, vector<8x256xf32>
    %1 = arith.truncf %0 : vector<8x256xf32> to vector<8x256xbf16>
    %c0_1 = arith.constant 0 : index
    %c0_2 = arith.constant 0 : index
    %2 = vector.load %arg2[%c0_1, %c0_2] : memref<256x128xbf16, #tpu.memory_space<vmem>>, vector<256x128xbf16>
    %cst = arith.constant dense<0.000000e+00> : vector<8x128xf32>
    %3 = tpu.matmul %1, %2, %cst {dimension_numbers = #tpu.dot_dimension_numbers<[1], [0], [0], [1], [0, 0, 1, 1], [], []>} : vector<8x256xbf16>, vector<256x128xbf16>, vector<8x128xf32> -> vector<8x128xf32>
    %c0_3 = arith.constant 0 : index
    %c0_4 = arith.constant 0 : index
    %4 = vector.load %arg3[%c0_3, %c0_4] : memref<1x128xf32, #tpu.memory_space<vmem>>, vector<1x128xf32>
    %5 = vector.broadcast %4 : vector<1x128xf32> to vector<8x128xf32>
    %6 = arith.addf %3, %5 : vector<8x128xf32>
    %cst_5 = arith.constant 0.000000e+00 : f32
    %7 = vector.broadcast %cst_5 : f32 to vector<8x128xf32>
    %8 = arith.maximumf %6, %7 : vector<8x128xf32>
    %9 = arith.truncf %8 : vector<8x128xf32> to vector<8x128xbf16>
    %c0_6 = arith.constant 0 : index
    %c0_7 = arith.constant 0 : index
    %10 = vector.load %arg4[%c0_6, %c0_7] : memref<128x64xbf16, #tpu.memory_space<vmem>>, vector<128x64xbf16>
    %cst_8 = arith.constant dense<0.000000e+00> : vector<8x64xf32>
    %11 = tpu.matmul %9, %10, %cst_8 {dimension_numbers = #tpu.dot_dimension_numbers<[1], [0], [0], [1], [0, 0, 1, 1], [], []>} : vector<8x128xbf16>, vector<128x64xbf16>, vector<8x64xf32> -> vector<8x64xf32>
    %c0_9 = arith.constant 0 : index
    %c0_10 = arith.constant 0 : index
    %12 = vector.load %arg5[%c0_9, %c0_10] : memref<1x64xf32, #tpu.memory_space<vmem>>, vector<1x64xf32>
    %13 = vector.broadcast %12 : vector<1x64xf32> to vector<8x64xf32>
    %14 = arith.addf %11, %13 : vector<8x64xf32>
    %cst_11 = arith.constant 0.000000e+00 : f32
    %15 = vector.broadcast %cst_11 : f32 to vector<8x64xf32>
    %16 = arith.maximumf %14, %15 : vector<8x64xf32>
    %17 = arith.truncf %16 : vector<8x64xf32> to vector<8x64xbf16>
    %c0_12 = arith.constant 0 : index
    %c0_13 = arith.constant 0 : index
    %18 = vector.load %arg6[%c0_12, %c0_13] : memref<64x64xbf16, #tpu.memory_space<vmem>>, vector<64x64xbf16>
    %cst_14 = arith.constant dense<0.000000e+00> : vector<8x64xf32>
    %19 = tpu.matmul %17, %18, %cst_14 {dimension_numbers = #tpu.dot_dimension_numbers<[1], [0], [0], [1], [0, 0, 1, 1], [], []>} : vector<8x64xbf16>, vector<64x64xbf16>, vector<8x64xf32> -> vector<8x64xf32>
    %c0_15 = arith.constant 0 : index
    %c0_16 = arith.constant 0 : index
    %20 = vector.load %arg7[%c0_15, %c0_16] : memref<1x64xf32, #tpu.memory_space<vmem>>, vector<1x64xf32>
    %21 = vector.broadcast %20 : vector<1x64xf32> to vector<8x64xf32>
    %22 = arith.addf %19, %21 : vector<8x64xf32>
    %c0_17 = arith.constant 0 : index
    %c0_18 = arith.constant 0 : index
    %23 = vector.load %arg8[%c0_17, %c0_18] : memref<8x64xf32, #tpu.memory_space<vmem>>, vector<8x64xf32>
    tpu.vector_store %arg8[%c0_17, %c0_18], %22 {strides = array<i32>} : memref<8x64xf32, #tpu.memory_space<vmem>>, vector<8x64xf32>,
    return
  }
  func.func @transform_0(%arg0: i32) -> (i32, i32) {
    %c0_i32 = arith.constant 0 : i32
    %c0_i32_0 = arith.constant 0 : i32
    return %arg0, %c0_i32 : i32, i32
  }
  func.func @transform_1(%arg0: i32) -> (i32, i32) {
    %c0_i32 = arith.constant 0 : i32
    %c0_i32_0 = arith.constant 0 : i32
    %c0_i32_1 = arith.constant 0 : i32
    return %c0_i32, %c0_i32_0 : i32, i32
  }
  func.func @transform_2(%arg0: i32) -> (i32, i32) {
    %c0_i32 = arith.constant 0 : i32
    %c0_i32_0 = arith.constant 0 : i32
    %c0_i32_1 = arith.constant 0 : i32
    return %c0_i32, %c0_i32_0 : i32, i32
  }
  func.func @transform_3(%arg0: i32) -> (i32, i32) {
    %c0_i32 = arith.constant 0 : i32
    %c0_i32_0 = arith.constant 0 : i32
    %c0_i32_1 = arith.constant 0 : i32
    return %c0_i32, %c0_i32_0 : i32, i32
  }
  func.func @transform_4(%arg0: i32) -> (i32, i32) {
    %c0_i32 = arith.constant 0 : i32
    %c0_i32_0 = arith.constant 0 : i32
    %c0_i32_1 = arith.constant 0 : i32
    return %c0_i32, %c0_i32_0 : i32, i32
  }
  func.func @transform_5(%arg0: i32) -> (i32, i32) {
    %c0_i32 = arith.constant 0 : i32
    %c0_i32_0 = arith.constant 0 : i32
    %c0_i32_1 = arith.constant 0 : i32
    return %c0_i32, %c0_i32_0 : i32, i32
  }
  func.func @transform_6(%arg0: i32) -> (i32, i32) {
    %c0_i32 = arith.constant 0 : i32
    %c0_i32_0 = arith.constant 0 : i32
    %c0_i32_1 = arith.constant 0 : i32
    return %c0_i32, %c0_i32_0 : i32, i32
  }
  func.func @transform_7(%arg0: i32) -> (i32, i32) {
    %c0_i32 = arith.constant 0 : i32
    %c0_i32_0 = arith.constant 0 : i32
    return %arg0, %c0_i32 : i32, i32
  }
}

</mosaic_0001>

<llo_original>
// kernel: tpu_custom_call.1
$region0: #{tpu_custom_call.1}
  #allocation0 [shape = 'u32[]', space=smem, size = 0x4, offset = 0x4, fixed_abs, tag = 'smem constant byte address 0x4 - core index']
  #allocation1 [shape = 'u32[144,128]{1,0:T(1,128)}', space=vmem, size = 0x12000, scoped, tag = 'internal scratch']
  %s0 = inlined_call_operand.vmem [shape: f32[8,256], index: 0, kind: input, shape index: {}]
  %s1 = inlined_call_operand.hbm [shape: bf16[256,128], index: 1, kind: input, shape index: {}]
  %s2 = inlined_call_operand.vmem [shape: f32[1,128], index: 2, kind: input, shape index: {}]
  %s3 = inlined_call_operand.vmem [shape: bf16[128,64], index: 3, kind: input, shape index: {}]
  %s4 = inlined_call_operand.vmem [shape: f32[1,64], index: 4, kind: input, shape index: {}]
  %s5 = inlined_call_operand.vmem [shape: bf16[64,64], index: 5, kind: input, shape index: {}]
  %s6 = inlined_call_operand.vmem [shape: f32[1,64], index: 6, kind: input, shape index: {}]
  %s7 = inlined_call_operand.hbm [shape: f32[8,64], index: 7, kind: output, shape index: {}]
  %s8 = sld [smem:[#allocation0]]
  $region42: #{tpu_custom_call.1} parent=0
    _
  %s10 = ssub.s32 1, %s8
  %s11 = scalar_select 0, %s10, %s8
  $region1: #{tpu_custom_call.1} parent=0
    #allocation2 [shape = 'u8[65536]{0}', space=vmem, size = 0x10000, scoped, tag = 'input window, operand 1, single buffered']
    #allocation3 [shape = 's32[1]{0}', space=sflag, size = 0x4, scoped, tag = 'scoped memory for tpu_custom_call.1']
    #allocation4 [shape = 's32[1]{0}', space=sflag, size = 0x4, scoped, tag = 'scoped memory for tpu_custom_call.1']
    #allocation5 [shape = 'u8[4096]{0}', space=vmem, size = 0x1000, scoped, tag = 'output window, operand 0, single buffered']
    %12 = vsyncpa [#allocation3], 0
    %13 = vsyncpa [#allocation4], 0
    // Predicated region
    $region2: #{tpu_custom_call.1} parent=1 // pred_check
      _
    $region3: #{tpu_custom_call.1} parent=1 // pred_check_branch
      %15 = sbr.rel (0) target = $region5
    $region4: #{tpu_custom_call.1} parent=1 // pred_region
      _
    $region5: #{tpu_custom_call.1} parent=1 // pred_fallthru
      _
    // Predicated region
    $region6: #{tpu_custom_call.1} parent=1 // pred_check
      _
    $region7: #{tpu_custom_call.1} parent=1 // pred_check_branch
      %17 = sbr.rel (0) target = $region9
    $region8: #{tpu_custom_call.1} parent=1 // pred_region
      %s19 = ssub.s32 2048, 2048
      %20 = vsyncadd [#allocation3], %s19
      %s21 = sshll.u32 [#allocation2], 4
      %s22 = int_to_ptr.vmem [resolvable:$true] %s21
      %27 = dma.hbm_to_vmem [thread:$0]  %s1, 2048, %s22, [#allocation3], 64, 64, 4
    $region9: #{tpu_custom_call.1} parent=1 // pred_fallthru
      _
    // Predicated region
    $region10: #{tpu_custom_call.1} parent=1 // pred_check
      _
    $region11: #{tpu_custom_call.1} parent=1 // pred_check_branch
      %29 = sbr.rel (0) target = $region13
    $region12: #{tpu_custom_call.1} parent=1 // pred_region
      _
    $region13: #{tpu_custom_call.1} parent=1 // pred_fallthru
      _
    // Predicated region
    $region14: #{tpu_custom_call.1} parent=1 // pred_check
      _
    $region15: #{tpu_custom_call.1} parent=1 // pred_check_branch
      %31 = sbr.rel (0) target = $region17
    $region16: #{tpu_custom_call.1} parent=1 // pred_region
      _
    $region17: #{tpu_custom_call.1} parent=1 // pred_fallthru
      _
    // Predicated region
    $region18: #{tpu_custom_call.1} parent=1 // pred_check
      _
    $region19: #{tpu_custom_call.1} parent=1 // pred_check_branch
      %33 = sbr.rel (0) target = $region21
    $region20: #{tpu_custom_call.1} parent=1 // pred_region
      _
    $region21: #{tpu_custom_call.1} parent=1 // pred_fallthru
      _
    // Predicated region
    $region22: #{tpu_custom_call.1} parent=1 // pred_check
      _
    $region23: #{tpu_custom_call.1} parent=1 // pred_check_branch
      %35 = sbr.rel (0) target = $region25
    $region24: #{tpu_custom_call.1} parent=1 // pred_region
      _
    $region25: #{tpu_custom_call.1} parent=1 // pred_fallthru
      _
    // Predicated region
    $region26: #{tpu_custom_call.1} parent=1 // pred_check
      _
    $region27: #{tpu_custom_call.1} parent=1 // pred_check_branch
      %37 = sbr.rel (0) target = $region29
    $region28: #{tpu_custom_call.1} parent=1 // pred_region
      _
    $region29: #{tpu_custom_call.1} parent=1 // pred_fallthru
      _
    // Predicated region
    $region30: #{tpu_custom_call.1} parent=1 // pred_check
      _
    $region31: #{tpu_custom_call.1} parent=1 // pred_check_branch
      %39 = sbr.rel (0) target = $region33
    $region32: #{tpu_custom_call.1} parent=1 // pred_region
      %40 = dma.done [#allocation3], 2048
    $region33: #{tpu_custom_call.1} parent=1 // pred_fallthru
      _
    %v42 = vld [vmem:[%s0] sm:$0xff]
    %v43 = vld [vmem:[%s0 + $0x8] sm:$0xff]
    %v44 = vpack.c.bf16 %v42, %v42
    %v45 = vpack.c.bf16 %v43, %v43
    %v46 = vld [vmem:[#allocation2] sm:$0xf]
    %v47 = vld [vmem:[#allocation2 + $0x4] sm:$0xf]
    %v48 = vld [vmem:[#allocation2 + $0x8] sm:$0xf]
    %v49 = vld [vmem:[#allocation2 + $0xc] sm:$0xf]
    %v50 = vld [vmem:[#allocation2 + $0x10] sm:$0xf]
    %v51 = vld [vmem:[#allocation2 + $0x14] sm:$0xf]
    %v52 = vld [vmem:[#allocation2 + $0x18] sm:$0xf]
    %v53 = vld [vmem:[#allocation2 + $0x1c] sm:$0xf]
    %v54 = vld [vmem:[#allocation2 + $0x20] sm:$0xf]
    %v55 = vld [vmem:[#allocation2 + $0x24] sm:$0xf]
    %v56 = vld [vmem:[#allocation2 + $0x28] sm:$0xf]
    %v57 = vld [vmem:[#allocation2 + $0x2c] sm:$0xf]
    %v58 = vld [vmem:[#allocation2 + $0x30] sm:$0xf]
    %v59 = vld [vmem:[#allocation2 + $0x34] sm:$0xf]
    %v60 = vld [vmem:[#allocation2 + $0x38] sm:$0xf]
    %v61 = vld [vmem:[#allocation2 + $0x3c] sm:$0xf]
    %v62 = vld [vmem:[#allocation2 + $0x40] sm:$0xf]
    %v63 = vld [vmem:[#allocation2 + $0x44] sm:$0xf]
    %v64 = vld [vmem:[#allocation2 + $0x48] sm:$0xf]
    %v65 = vld [vmem:[#allocation2 + $0x4c] sm:$0xf]
    %v66 = vld [vmem:[#allocation2 + $0x50] sm:$0xf]
    %v67 = vld [vmem:[#allocation2 + $0x54] sm:$0xf]
    %v68 = vld [vmem:[#allocation2 + $0x58] sm:$0xf]
    %v69 = vld [vmem:[#allocation2 + $0x5c] sm:$0xf]
    %v70 = vld [vmem:[#allocation2 + $0x60] sm:$0xf]
    %v71 = vld [vmem:[#allocation2 + $0x64] sm:$0xf]
    %v72 = vld [vmem:[#allocation2 + $0x68] sm:$0xf]
    %v73 = vld [vmem:[#allocation2 + $0x6c] sm:$0xf]
    %v74 = vld [vmem:[#allocation2 + $0x70] sm:$0xf]
    %v75 = vld [vmem:[#allocation2 + $0x74] sm:$0xf]
    %v76 = vld [vmem:[#allocation2 + $0x78] sm:$0xf]
    %v77 = vld [vmem:[#allocation2 + $0x7c] sm:$0xf]
    %v78 = vld [vmem:[%s2] sm:$0x1]
    %v80 = vlaneseq
    %v81 = vshrl.u32 %v80, 7
    %v82 = vsub.s32 0, %v81
    %v83 = vrot.slane %v78, %v82
    %v117 = vunpack.c.l.b16 %v46
    %v118 = vunpack.c.l.b16 %v47
    %v119 = vunpack.c.l.b16 %v48
    %v120 = vunpack.c.l.b16 %v49
    %v121 = vunpack.c.l.b16 %v50
    %v122 = vunpack.c.l.b16 %v51
    %v123 = vunpack.c.l.b16 %v52
    %v124 = vunpack.c.l.b16 %v53
    %v125 = vunpack.c.l.b16 %v54
    %v126 = vunpack.c.l.b16 %v55
    %v127 = vunpack.c.l.b16 %v56
    %v128 = vunpack.c.l.b16 %v57
    %v129 = vunpack.c.l.b16 %v58
    %v130 = vunpack.c.l.b16 %v59
    %v131 = vunpack.c.l.b16 %v60
    %v132 = vunpack.c.l.b16 %v61
    %v133 = vunpack.c.l.b16 %v62
    %v134 = vunpack.c.l.b16 %v63
    %v135 = vunpack.c.l.b16 %v64
    %v136 = vunpack.c.l.b16 %v65
    %v137 = vunpack.c.l.b16 %v66
    %v138 = vunpack.c.l.b16 %v67
    %v139 = vunpack.c.l.b16 %v68
    %v140 = vunpack.c.l.b16 %v69
    %v141 = vunpack.c.l.b16 %v70
    %v142 = vunpack.c.l.b16 %v71
    %v143 = vunpack.c.l.b16 %v72
    %v144 = vunpack.c.l.b16 %v73
    %v145 = vunpack.c.l.b16 %v74
    %v146 = vunpack.c.l.b16 %v75
    %v147 = vunpack.c.l.b16 %v76
    %v148 = vunpack.c.l.b16 %v77
    %v149 = vpack.c.b16 %v118, %v117
    %v150 = vpack.c.b16 %v120, %v119
    %v151 = vpack.c.b16 %v122, %v121
    %v152 = vpack.c.b16 %v124, %v123
    %v153 = vpack.c.b16 %v126, %v125
    %v154 = vpack.c.b16 %v128, %v127
    %v155 = vpack.c.b16 %v130, %v129
    %v156 = vpack.c.b16 %v132, %v131
    %v157 = vpack.c.b16 %v134, %v133
    %v158 = vpack.c.b16 %v136, %v135
    %v159 = vpack.c.b16 %v138, %v137
    %v160 = vpack.c.b16 %v140, %v139
    %v161 = vpack.c.b16 %v142, %v141
    %v162 = vpack.c.b16 %v144, %v143
    %v163 = vpack.c.b16 %v146, %v145
    %v164 = vpack.c.b16 %v148, %v147
    %181 = vmatprep.subr.bf16.mxu0 0
    %182 = vmatpush1.bf16.msra.mxu0 %v149
    %183 = vmatprep.subr.bf16.mxu0 0
    %184 = vmatpush1.bf16.msra.mxu0 %v150
    %185 = vmatprep.subr.bf16.mxu0 0
    %186 = vmatpush1.bf16.msra.mxu0 %v151
    %187 = vmatprep.subr.bf16.mxu0 0
    %188 = vmatpush1.bf16.msra.mxu0 %v152
    %189 = vmatprep.subr.bf16.mxu0 0
    %190 = vmatpush1.bf16.msra.mxu0 %v153
    %191 = vmatprep.subr.bf16.mxu0 0
    %192 = vmatpush1.bf16.msra.mxu0 %v154
    %193 = vmatprep.subr.bf16.mxu0 0
    %194 = vmatpush1.bf16.msra.mxu0 %v155
    %195 = vmatprep.subr.bf16.mxu0 0
    %196 = vmatpush1.bf16.msra.mxu0 %v156
    %197 = vmatprep.subr.bf16.mxu0 0
    %198 = vmatpush1.bf16.msra.mxu0 %v157
    %199 = vmatprep.subr.bf16.mxu0 0
    %200 = vmatpush1.bf16.msra.mxu0 %v158
    %201 = vmatprep.subr.bf16.mxu0 0
    %202 = vmatpush1.bf16.msra.mxu0 %v159
    %203 = vmatprep.subr.bf16.mxu0 0
    %204 = vmatpush1.bf16.msra.mxu0 %v160
    %205 = vmatprep.subr.bf16.mxu0 0
    %206 = vmatpush1.bf16.msra.mxu0 %v161
    %207 = vmatprep.subr.bf16.mxu0 0
    %208 = vmatpush1.bf16.msra.mxu0 %v162
    %209 = vmatprep.subr.bf16.mxu0 0
    %210 = vmatpush1.bf16.msra.mxu0 %v163
    %211 = vmatprep.subr.bf16.mxu0 0
    %212 = vmatpush1.bf16.msra.mxu0 %v164
    %213 = vmatprep.mubr.bf16.mxu0 %v45
    %214 = vmatmul.mubr.bf16.gmra.mrb[0].mxu0 %v44
    %v215 = vpop.f32.mrb[0].mxu0
    %v216 = vadd.f32 %v83, %v215
    %v217 = vpop.f32.mrb[0].mxu0
    %v218 = vpop.f32.mrb[0].mxu0
    %v219 = vpop.f32.mrb[0].mxu0
    %220 = vdwg.mxu0
    %v221 = vmax.f32 %v216, 0.0
    %v222 = vpack.c.bf16 %v221, %v221
    %v223 = vld [vmem:[%s3] sm:$0xf]
    %v224 = vld [vmem:[%s3 + $0x4] sm:$0xf]
    %v225 = vld [vmem:[%s3 + $0x8] sm:$0xf]
    %v226 = vld [vmem:[%s3 + $0xc] sm:$0xf]
    %v227 = vld [vmem:[%s3 + $0x10] sm:$0xf]
    %v228 = vld [vmem:[%s3 + $0x14] sm:$0xf]
    %v229 = vld [vmem:[%s3 + $0x18] sm:$0xf]
    %v230 = vld [vmem:[%s3 + $0x1c] sm:$0xf]
    %v231 = vld [vmem:[%s3 + $0x20] sm:$0xf]
    %v232 = vld [vmem:[%s3 + $0x24] sm:$0xf]
    %v233 = vld [vmem:[%s3 + $0x28] sm:$0xf]
    %v234 = vld [vmem:[%s3 + $0x2c] sm:$0xf]
    %v235 = vld [vmem:[%s3 + $0x30] sm:$0xf]
    %v236 = vld [vmem:[%s3 + $0x34] sm:$0xf]
    %v237 = vld [vmem:[%s3 + $0x38] sm:$0xf]
    %v238 = vld [vmem:[%s3 + $0x3c] sm:$0xf]
    %v239 = vld [vmem:[%s4] sm:$0x1]
    %v241 = vlaneseq
    %v242 = vshrl.u32 %v241, 7
    %v243 = vsub.s32 0, %v242
    %v244 = vrot.slane %v239, %v243
    %v262 = vunpack.c.l.b16 %v223
    %v263 = vunpack.c.l.b16 %v224
    %v264 = vunpack.c.l.b16 %v225
    %v265 = vunpack.c.l.b16 %v226
    %v266 = vunpack.c.l.b16 %v227
    %v267 = vunpack.c.l.b16 %v228
    %v268 = vunpack.c.l.b16 %v229
    %v269 = vunpack.c.l.b16 %v230
    %v270 = vunpack.c.l.b16 %v231
    %v271 = vunpack.c.l.b16 %v232
    %v272 = vunpack.c.l.b16 %v233
    %v273 = vunpack.c.l.b16 %v234
    %v274 = vunpack.c.l.b16 %v235
    %v275 = vunpack.c.l.b16 %v236
    %v276 = vunpack.c.l.b16 %v237
    %v277 = vunpack.c.l.b16 %v238
    %v278 = vpack.c.b16 %v263, %v262
    %v279 = vpack.c.b16 %v265, %v264
    %v280 = vpack.c.b16 %v267, %v266
    %v281 = vpack.c.b16 %v269, %v268
    %v282 = vpack.c.b16 %v271, %v270
    %v283 = vpack.c.b16 %v273, %v272
    %v284 = vpack.c.b16 %v275, %v274
    %v285 = vpack.c.b16 %v277, %v276
    %294 = vmatprep.subr.bf16.mxu0 0
    %295 = vmatpush1.bf16.msra.mxu0 %v278
    %296 = vmatprep.subr.bf16.mxu0 0
    %297 = vmatpush1.bf16.msra.mxu0 %v279
    %298 = vmatprep.subr.bf16.mxu0 0
    %299 = vmatpush1.bf16.msra.mxu0 %v280
    %300 = vmatprep.subr.bf16.mxu0 0
    %301 = vmatpush1.bf16.msra.mxu0 %v281
    %302 = vmatprep.subr.bf16.mxu0 0
    %303 = vmatpush1.bf16.msra.mxu0 %v282
    %304 = vmatprep.subr.bf16.mxu0 0
    %305 = vmatpush1.bf16.msra.mxu0 %v283
    %306 = vmatprep.subr.bf16.mxu0 0
    %307 = vmatpush1.bf16.msra.mxu0 %v284
    %308 = vmatprep.subr.bf16.mxu0 0
    %309 = vmatpush1.bf16.msra.mxu0 %v285
    %310 = vmatprep.subr.bf16.mxu0 0
    %311 = vmatpush1.bf16.msra.mxu0 0
    %312 = vmatprep.subr.bf16.mxu0 0
    %313 = vmatpush1.bf16.msra.mxu0 0
    %314 = vmatprep.subr.bf16.mxu0 0
    %315 = vmatpush1.bf16.msra.mxu0 0
    %316 = vmatprep.subr.bf16.mxu0 0
    %317 = vmatpush1.bf16.msra.mxu0 0
    %318 = vmatprep.subr.bf16.mxu0 0
    %319 = vmatpush1.bf16.msra.mxu0 0
    %320 = vmatprep.subr.bf16.mxu0 0
    %321 = vmatpush1.bf16.msra.mxu0 0
    %322 = vmatprep.subr.bf16.mxu0 0
    %323 = vmatpush1.bf16.msra.mxu0 0
    %324 = vmatprep.subr.bf16.mxu0 0
    %325 = vmatpush1.bf16.msra.mxu0 0
    %326 = vmatprep.mubr.bf16.mxu0 0
    %327 = vmatmul.mubr.bf16.gmra.mrb[0].mxu0 %v222
    %v328 = vpop.f32.mrb[0].mxu0
    %v329 = vadd.f32 %v244, %v328
    %v330 = vpop.f32.mrb[0].mxu0
    %v331 = vpop.f32.mrb[0].mxu0
    %v332 = vpop.f32.mrb[0].mxu0
    %333 = vdwg.mxu0
    %v334 = vmax.f32 %v329, 0.0
    %v335 = vpack.c.bf16 %v334, %v334
    %v336 = vld [vmem:[%s5] sm:$0xf]
    %v337 = vld [vmem:[%s5 + $0x4] sm:$0xf]
    %v338 = vld [vmem:[%s5 + $0x8] sm:$0xf]
    %v339 = vld [vmem:[%s5 + $0xc] sm:$0xf]
    %v340 = vld [vmem:[%s5 + $0x10] sm:$0xf]
    %v341 = vld [vmem:[%s5 + $0x14] sm:$0xf]
    %v342 = vld [vmem:[%s5 + $0x18] sm:$0xf]
    %v343 = vld [vmem:[%s5 + $0x1c] sm:$0xf]
    %v344 = vld [vmem:[%s6] sm:$0x1]
    %v346 = vlaneseq
    %v347 = vshrl.u32 %v346, 7
    %v348 = vsub.s32 0, %v347
    %v349 = vrot.slane %v344, %v348
    %v359 = vunpack.c.l.b16 %v336
    %v360 = vunpack.c.l.b16 %v337
    %v361 = vunpack.c.l.b16 %v338
    %v362 = vunpack.c.l.b16 %v339
    %v363 = vunpack.c.l.b16 %v340
    %v364 = vunpack.c.l.b16 %v341
    %v365 = vunpack.c.l.b16 %v342
    %v366 = vunpack.c.l.b16 %v343
    %v367 = vpack.c.b16 %v360, %v359
    %v368 = vpack.c.b16 %v362, %v361
    %v369 = vpack.c.b16 %v364, %v363
    %v370 = vpack.c.b16 %v366, %v365
    %vm375 = vcmask 523264
    %v377 = vsel %vm375, %v335, 0
    %379 = vmatprep.subr.bf16.mxu0 0
    %380 = vmatpush1.bf16.msra.mxu0 %v367
    %381 = vmatprep.subr.bf16.mxu0 0
    %382 = vmatpush1.bf16.msra.mxu0 %v368
    %383 = vmatprep.subr.bf16.mxu0 0
    %384 = vmatpush1.bf16.msra.mxu0 %v369
    %385 = vmatprep.subr.bf16.mxu0 0
    %386 = vmatpush1.bf16.msra.mxu0 %v370
    %387 = vmatprep.subr.bf16.mxu0 0
    %388 = vmatpush1.bf16.msra.mxu0 0
    %389 = vmatprep.subr.bf16.mxu0 0
    %390 = vmatpush1.bf16.msra.mxu0 0
    %391 = vmatprep.subr.bf16.mxu0 0
    %392 = vmatpush1.bf16.msra.mxu0 0
    %393 = vmatprep.subr.bf16.mxu0 0
    %394 = vmatpush1.bf16.msra.mxu0 0
    %395 = vmatprep.subr.bf16.mxu0 0
    %396 = vmatpush1.bf16.msra.mxu0 0
    %397 = vmatprep.subr.bf16.mxu0 0
    %398 = vmatpush1.bf16.msra.mxu0 0
    %399 = vmatprep.subr.bf16.mxu0 0
    %400 = vmatpush1.bf16.msra.mxu0 0
    %401 = vmatprep.subr.bf16.mxu0 0
    %402 = vmatpush1.bf16.msra.mxu0 0
    %403 = vmatprep.subr.bf16.mxu0 0
    %404 = vmatpush1.bf16.msra.mxu0 0
    %405 = vmatprep.subr.bf16.mxu0 0
    %406 = vmatpush1.bf16.msra.mxu0 0
    %407 = vmatprep.subr.bf16.mxu0 0
    %408 = vmatpush1.bf16.msra.mxu0 0
    %409 = vmatprep.subr.bf16.mxu0 0
    %410 = vmatpush1.bf16.msra.mxu0 0
    %411 = vmatprep.mubr.bf16.mxu0 0
    %412 = vmatmul.mubr.bf16.gmra.mrb[0].mxu0 %v377
    %v413 = vpop.f32.mrb[0].mxu0
    %v414 = vadd.f32 %v349, %v413
    %v415 = vpop.f32.mrb[0].mxu0
    %v416 = vpop.f32.mrb[0].mxu0
    %v417 = vpop.f32.mrb[0].mxu0
    %418 = vdwg.mxu0
    %419 = vst.msk [vmem:[#allocation5] sm:$0xff] %vm375, %v414
    // Predicated region
    $region34: #{tpu_custom_call.1} parent=1 // pred_check
      _
    $region35: #{tpu_custom_call.1} parent=1 // pred_check_branch
      %421 = sbr.rel (0) target = $region37
    $region36: #{tpu_custom_call.1} parent=1 // pred_region
      %s423 = ssub.s32 128, 128
      %424 = vsyncadd [#allocation4], %s423
      %s426 = sshll.u32 [#allocation5], 4
      %s427 = int_to_ptr.vmem [resolvable:$true] %s426
      %429 = dma.vmem_to_hbm [thread:$0]  %s427, 128, %s7, [#allocation4]
    $region37: #{tpu_custom_call.1} parent=1 // pred_fallthru
      _
    // Predicated region
    $region38: #{tpu_custom_call.1} parent=1 // pred_check
      _
    $region39: #{tpu_custom_call.1} parent=1 // pred_check_branch
      %431 = sbr.rel (0) target = $region41
    $region40: #{tpu_custom_call.1} parent=1 // pred_region
      %432 = dma.done [#allocation4], 128
    $region41: #{tpu_custom_call.1} parent=1 // pred_fallthru
      _
    %433 = vsyncpa [#allocation3], 1
    %434 = vsyncpa [#allocation4], 1

</llo_original>
